<compile_context>
chip_gen: v6e
topology: v6e:2x2x1
jax: 0.10.0
libtpu: 0.0.40
codegen_flags: <defaults>
</compile_context>

<pallas_src>
import jax
import jax.numpy as jnp
from jax.experimental import pallas as pl
from jax.experimental.pallas import tpu as pltpu


def _round_up(x, m):
    return ((x + m - 1) // m) * m


def _pick_tile(dim, base, cap):
    """Largest multiple of `base` that divides `dim` (dim % base == 0) and is <= cap."""
    m = dim // base
    k_max = max(1, min(cap // base, m))
    for k in range(k_max, 0, -1):
        if m % k == 0:
            return base * k
    return base


def _rprelu_kernel(x_ref, p_ref, o_ref):
    # x block: (TILE_R, TILE_HW); params block: (TILE_R, 3) fp32.
    x = x_ref[...].astype(jnp.float32)
    p = p_ref[...]
    bx = p[:, 0:1]          # per-row bias_x
    by = p[:, 1:2]          # per-row bias_y
    al = p[:, 2:3]          # per-row PReLU slope

    v = x + bx                              # shift_x
    v = jnp.where(v >= 0, v, al * v)        # per-channel PReLU
    v = v + by                              # shift_y
    o_ref[...] = v.astype(o_ref.dtype)


def rprelu(x_nchw, bias_x, bias_y, alpha, *, max_tile_rows=256, max_tile_lanes=2048):
    """x_nchw: (N, C, H, W); bias_x, bias_y, alpha: (C,) per-channel params."""
    N, C, H, W = x_nchw.shape
    HW = H * W
    R = N * C

    # Flatten to a lane-dense 2-D slab; rows are (n, c) pairs.
    x2d = x_nchw.reshape(R, HW)

    # Fuse the three per-channel params into one fp32 (R, 3) array (row = n*C + c).
    params_c = jnp.stack(
        [bias_x.astype(jnp.float32),
         bias_y.astype(jnp.float32),
         alpha.astype(jnp.float32)],
        axis=-1,
    )                                        # (C, 3)
    params = jnp.tile(params_c, (N, 1))      # (R, 3)

    # Pad sublane axis to x8 and lane axis to x128 so every block is unmasked.
    R_pad = _round_up(R, 8)
    HW_pad = _round_up(HW, 128)
    if R_pad != R or HW_pad != HW:
        x2d = jnp.pad(x2d, ((0, R_pad - R), (0, HW_pad - HW)))
    if R_pad != R:
        params = jnp.pad(params, ((0, R_pad - R), (0, 0)))

    tile_r = _pick_tile(R_pad, 8, max_tile_rows)
    tile_hw = _pick_tile(HW_pad, 128, max_tile_lanes)
    grid = (R_pad // tile_r, HW_pad // tile_hw)

    out2d = pl.pallas_call(
        _rprelu_kernel,
        out_shape=jax.ShapeDtypeStruct((R_pad, HW_pad), x_nchw.dtype),
        grid_spec=pltpu.PrefetchScalarGridSpec(
            num_scalar_prefetch=0,
            grid=grid,
            in_specs=[
                pl.BlockSpec((tile_r, tile_hw), lambda i, j: (i, j)),
                pl.BlockSpec((tile_r, 3), lambda i, j: (i, 0)),
            ],
            out_specs=pl.BlockSpec((tile_r, tile_hw), lambda i, j: (i, j)),
        ),
        compiler_params=pltpu.CompilerParams(
            dimension_semantics=("parallel", "parallel")),
    )(x2d, params)

    if R_pad != R or HW_pad != HW:
        out2d = out2d[:R, :HW]
    return out2d.reshape(N, C, H, W)


def rprelu_ref(x_nchw, bias_x, bias_y, alpha):
    # Pure-JAX reference matching PyTorch semantics.
    bx = bias_x.reshape(1, -1, 1, 1)
    by = bias_y.reshape(1, -1, 1, 1)
    al = alpha.reshape(1, -1, 1, 1)
    v = x_nchw + bx
    v = jnp.where(v >= 0, v, al * v)
    return v + by


if __name__ == "__main__":
    key = jax.random.PRNGKey(0)
    kx, kbx, kby = jax.random.split(key, 3)

    N, C, H, W = 2, 4, 16, 16
    x = jax.random.normal(kx, (N, C, H, W), dtype=jnp.float32)

    # Deterministic parameter init (module default: biases zero, alpha=0.25).
    # Use small nonzero biases so the shift path is actually exercised.
    bias_x = 0.1 * jax.random.normal(kbx, (C,), dtype=jnp.float32)
    bias_y = 0.1 * jax.random.normal(kby, (C,), dtype=jnp.float32)
    alpha = jnp.full((C,), 0.25, dtype=jnp.float32)   # nn.PReLU default init

    out = rprelu(x, bias_x, bias_y, alpha)
    out = jax.block_until_ready(out)

    ref = rprelu_ref(x, bias_x, bias_y, alpha)
    assert out.shape == (N, C, H, W)
    assert jnp.allclose(out, ref, atol=1e-6, rtol=1e-6)

    print("KERNEL_OK")
</pallas_src>

<mosaic_0001>
module attributes {stable_mosaic.version = 11 : i64} {
  func.func @_rprelu_kernel(%arg0: i32, %arg1: i32, %arg2: memref<8x256xf32, #tpu.memory_space<vmem>>, %arg3: memref<8x3xf32, #tpu.memory_space<vmem>>, %arg4: memref<8x256xf32, #tpu.memory_space<vmem>>) attributes {dimension_semantics = [#tpu.dimension_semantics<parallel>, #tpu.dimension_semantics<parallel>], iteration_bounds = array<i64: 1, 1>, scalar_prefetch = 0 : i64, scratch_operands = 0 : i64, tpu.core_type = #tpu.core_type<tc>, window_params = [{transform_indices = @transform_0, window_bounds = array<i64: 8, 256>}, {transform_indices = @transform_1, window_bounds = array<i64: 8, 3>}, {transform_indices = @transform_2, window_bounds = array<i64: 8, 256>}]} {
    %c0 = arith.constant 0 : index
    %c0_0 = arith.constant 0 : index
    %0 = vector.load %arg2[%c0, %c0_0] : memref<8x256xf32, #tpu.memory_space<vmem>>, vector<8x256xf32>
    %c0_1 = arith.constant 0 : index
    %c0_2 = arith.constant 0 : index
    %1 = vector.load %arg3[%c0_1, %c0_2] : memref<8x3xf32, #tpu.memory_space<vmem>>, vector<8x3xf32>
    %2 = vector.extract_strided_slice %1 {offsets = [0, 0], sizes = [8, 1], strides = [1, 1]} : vector<8x3xf32> to vector<8x1xf32>
    %3 = vector.extract_strided_slice %1 {offsets = [0, 1], sizes = [8, 1], strides = [1, 1]} : vector<8x3xf32> to vector<8x1xf32>
    %4 = vector.extract_strided_slice %1 {offsets = [0, 2], sizes = [8, 1], strides = [1, 1]} : vector<8x3xf32> to vector<8x1xf32>
    %5 = vector.broadcast %2 : vector<8x1xf32> to vector<8x256xf32>
    %6 = arith.addf %0, %5 : vector<8x256xf32>
    %cst = arith.constant 0.000000e+00 : f32
    %7 = vector.broadcast %cst : f32 to vector<8x256xf32>
    %8 = arith.cmpf oge, %6, %7 : vector<8x256xf32>
    %9 = vector.broadcast %4 : vector<8x1xf32> to vector<8x256xf32>
    %10 = arith.mulf %9, %6 : vector<8x256xf32>
    %11 = arith.select %8, %6, %10 : vector<8x256xi1>, vector<8x256xf32>
    %12 = vector.broadcast %3 : vector<8x1xf32> to vector<8x256xf32>
    %13 = arith.addf %11, %12 : vector<8x256xf32>
    %c0_3 = arith.constant 0 : index
    %c0_4 = arith.constant 0 : index
    %14 = vector.load %arg4[%c0_3, %c0_4] : memref<8x256xf32, #tpu.memory_space<vmem>>, vector<8x256xf32>
    tpu.vector_store %arg4[%c0_3, %c0_4], %13 {strides = array<i32>} : memref<8x256xf32, #tpu.memory_space<vmem>>, vector<8x256xf32>,
    return
  }
  func.func @transform_0(%arg0: i32, %arg1: i32) -> (i32, i32) {
    %c0_i32 = arith.constant 0 : i32
    return %arg0, %arg1 : i32, i32
  }
  func.func @transform_1(%arg0: i32, %arg1: i32) -> (i32, i32) {
    %c0_i32 = arith.constant 0 : i32
    %c0_i32_0 = arith.constant 0 : i32
    return %arg0, %c0_i32 : i32, i32
  }
  func.func @transform_2(%arg0: i32, %arg1: i32) -> (i32, i32) {
    %c0_i32 = arith.constant 0 : i32
    return %arg0, %arg1 : i32, i32
  }
}

</mosaic_0001>

<llo_original>
// kernel: tpu_custom_call.1
$region0: #{tpu_custom_call.1}
  #allocation0 [shape = 'u32[]', space=smem, size = 0x4, offset = 0x4, fixed_abs, tag = 'smem constant byte address 0x4 - core index']
  #allocation1 [shape = 'u32[144,128]{1,0:T(1,128)}', space=vmem, size = 0x12000, scoped, tag = 'internal scratch']
  %s0 = inlined_call_operand.hbm [shape: f32[8,256], index: 0, kind: input, shape index: {}]
  %s1 = inlined_call_operand.vmem [shape: f32[8,3], index: 1, kind: input, shape index: {}]
  %s2 = inlined_call_operand.hbm [shape: f32[8,256], index: 2, kind: output, shape index: {}]
  %s3 = sld [smem:[#allocation0]]
  $region22: #{tpu_custom_call.1} parent=0
    _
  %s5 = ssub.s32 1, %s3
  %s6 = scalar_select 0, %s5, %s3
  $region1: #{tpu_custom_call.1} parent=0
    #allocation2 [shape = 'u8[8192]{0}', space=vmem, size = 0x2000, scoped, tag = 'input window, operand 0, single buffered']
    #allocation3 [shape = 's32[1]{0}', space=sflag, size = 0x4, scoped, tag = 'scoped memory for tpu_custom_call.1']
    #allocation4 [shape = 's32[1]{0}', space=sflag, size = 0x4, scoped, tag = 'scoped memory for tpu_custom_call.1']
    #allocation5 [shape = 'u8[8192]{0}', space=vmem, size = 0x2000, scoped, tag = 'output window, operand 0, single buffered']
    %7 = vsyncpa [#allocation3], 0
    %8 = vsyncpa [#allocation4], 0
    // Predicated region
    $region2: #{tpu_custom_call.1} parent=1 // pred_check
      _
    $region3: #{tpu_custom_call.1} parent=1 // pred_check_branch
      %10 = sbr.rel (0) target = $region5
    $region4: #{tpu_custom_call.1} parent=1 // pred_region
      %s12 = ssub.s32 256, 256
      %13 = vsyncadd [#allocation3], %s12
      %s15 = sshll.u32 [#allocation2], 4
      %s16 = int_to_ptr.vmem [resolvable:$true] %s15
      %18 = dma.hbm_to_vmem [thread:$0]  %s0, 256, %s16, [#allocation3]
    $region5: #{tpu_custom_call.1} parent=1 // pred_fallthru
      _
    // Predicated region
    $region6: #{tpu_custom_call.1} parent=1 // pred_check
      _
    $region7: #{tpu_custom_call.1} parent=1 // pred_check_branch
      %20 = sbr.rel (0) target = $region9
    $region8: #{tpu_custom_call.1} parent=1 // pred_region
      _
    $region9: #{tpu_custom_call.1} parent=1 // pred_fallthru
      _
    // Predicated region
    $region10: #{tpu_custom_call.1} parent=1 // pred_check
      _
    $region11: #{tpu_custom_call.1} parent=1 // pred_check_branch
      %22 = sbr.rel (0) target = $region13
    $region12: #{tpu_custom_call.1} parent=1 // pred_region
      %23 = dma.done [#allocation3], 256
    $region13: #{tpu_custom_call.1} parent=1 // pred_fallthru
      _
    %v24 = vld [vmem:[#allocation2] sm:$0xff]
    %v25 = vld [vmem:[#allocation2 + $0x8] sm:$0xff]
    %v26 = vld [vmem:[%s1] sm:$0xff]
    %28 = vset.pattern.permute.xlu0 0
    %29 = vperm.xlu0 %28, %v26
    %v30 = vpop.permute.xlu0 %29
    %v32 = vadd.f32 %v24, %v30
    %v33 = vadd.f32 %v25, %v30
    %vm34 = vcmp.ge.f32.partialorder %v32, 0.0
    %vm35 = vcmp.ge.f32.partialorder %v33, 0.0
    %36 = vset.pattern.permute.xlu0 2
    %37 = vperm.xlu0 %36, %v26
    %v38 = vpop.permute.xlu0 %37
    %v40 = vmul.f32 %v38, %v32
    %v41 = vmul.f32 %v38, %v33
    %v42 = vsel %vm34, %v32, %v40
    %v43 = vsel %vm35, %v33, %v41
    %44 = vset.pattern.permute.xlu0 1
    %45 = vperm.xlu0 %44, %v26
    %v46 = vpop.permute.xlu0 %45
    %v48 = vadd.f32 %v42, %v46
    %v49 = vadd.f32 %v43, %v46
    %50 = vst [vmem:[#allocation5] sm:$0xff] %v48
    %51 = vst [vmem:[#allocation5 + $0x8] sm:$0xff] %v49
    // Predicated region
    $region14: #{tpu_custom_call.1} parent=1 // pred_check
      _
    $region15: #{tpu_custom_call.1} parent=1 // pred_check_branch
      %53 = sbr.rel (0) target = $region17
    $region16: #{tpu_custom_call.1} parent=1 // pred_region
      %s55 = ssub.s32 256, 256
      %56 = vsyncadd [#allocation4], %s55
      %s58 = sshll.u32 [#allocation5], 4
      %s59 = int_to_ptr.vmem [resolvable:$true] %s58
      %61 = dma.vmem_to_hbm [thread:$0]  %s59, 256, %s2, [#allocation4]
    $region17: #{tpu_custom_call.1} parent=1 // pred_fallthru
      _
    // Predicated region
    $region18: #{tpu_custom_call.1} parent=1 // pred_check
      _
    $region19: #{tpu_custom_call.1} parent=1 // pred_check_branch
      %63 = sbr.rel (0) target = $region21
    $region20: #{tpu_custom_call.1} parent=1 // pred_region
      %64 = dma.done [#allocation4], 256
    $region21: #{tpu_custom_call.1} parent=1 // pred_fallthru
      _
    %65 = vsyncpa [#allocation3], 1
    %66 = vsyncpa [#allocation4], 1

</llo_original>
